<compile_context>
chip_gen: v6e
topology: v6e:2x2x1
jax: 0.10.0
libtpu: 0.0.40
codegen_flags: <defaults>
</compile_context>

<pallas_src>
import jax
import jax.numpy as jnp
from jax.experimental import pallas as pl
from jax.experimental.pallas import tpu as pltpu

IN_FEATS = 16
HIDDEN_FEATS = 32
H_PAD = 128          # lane-dense weight / output width (multiple of 128 -> unmasked vst)
BN_EPS = 1e-5
DEFAULT_TM = 256     # row tile for real graphs; the toy test below uses 16


def _vmem_limit(*buffer_bytes):
    # Explicit scoped-VMEM limit: above the v5e 16 MiB default, under v7x's 64 MiB physical.
    est = sum(int(b) for b in buffer_bytes)
    return int(min(max(4 * est, 32 << 20), 48 << 20))


# ----------------------------- Pallas kernels -----------------------------

def _gcn_tile_kernel(adj_ref, xa_all_ref, xa_tile_ref, wlin_ref, wres_ref,
                     y_ref, stats_ref):
    """Pass 1, one dst row tile.

    adj_ref     : (TM, N_pad)  bf16  edge-count adjacency rows for this dst tile
    xa_all_ref  : (N_pad, F+1) bf16  node features + validity/ones column (src side)
    xa_tile_ref : (TM, F+1)    bf16  same table, rows of this dst tile (residual branch)
    wlin_ref    : (F+1, Hp)    bf16  [W_lin^T ; b_lin] zero-padded to Hp lanes
    wres_ref    : (F+1, Hp)    bf16  [W_res^T ; b_res] zero-padded to Hp lanes
    y_ref       : (TM, Hp)     f32   pre-BN activations
    stats_ref   : (1, 2, Hp)   f32   per-tile [sum ; sum-of-squares]
    """
    # Reassociated aggregation: A_tile @ [X | m]  (bf16 MXU inputs, f32 accumulation).
    # Column F of the result is the per-dst edge count (carries b_lin after matmul 2).
    agg = jnp.dot(adj_ref[...], xa_all_ref[...], preferred_element_type=jnp.float32)
    # (A @ [X|m]) @ [W_lin^T ; b_lin] -- intermediate cast back to bf16 so both matmuls
    # stay on the fast bf16 MXU path (no multi-pass f32 MXU mode).
    msg = jnp.dot(agg.astype(jnp.bfloat16), wlin_ref[...],
                  preferred_element_type=jnp.float32)
    # Residual branch: relu([X | m] @ [W_res^T ; b_res]).
    # Padded rows have m == 0 (all-zero row) -> their y is exactly 0.
    res = jnp.dot(xa_tile_ref[...], wres_ref[...], preferred_element_type=jnp.float32)
    y = msg + jnp.maximum(res, 0.0)            # Dropout(p=0.0) == identity
    y_ref[...] = y
    # Single-sweep partial BN statistics (padded rows contribute exactly 0).
    s = jnp.sum(y, axis=0, keepdims=True)
    sq = jnp.sum(y * y, axis=0, keepdims=True)
    stats_ref[...] = jnp.concatenate([s, sq], axis=0)[None, :, :]


def _bn_apply_kernel(y_ref, scale_ref, shift_ref, o_ref):
    """Pass 2, one dst row tile: y * gamma/sqrt(var+eps) + (beta - mean*gamma/sqrt(var+eps))."""
    o_ref[...] = (y_ref[...] * scale_ref[0] + shift_ref[0]).astype(o_ref.dtype)


# ----------------------------- pallas_call wrappers -----------------------------

def hetero_gcn_agg_pallas(adj, x_aug, wlin, wres, tm):
    n_pad = adj.shape[0]
    fa = x_aug.shape[1]
    hp = wlin.shape[1]
    n_tiles = n_pad // tm
    vmem = _vmem_limit(tm * n_pad * 2,     # adj row tile (bf16), double-buffered by default
                       n_pad * hp * 2,     # whole-resident node table (lane-padded)
                       tm * hp * 2,        # dst-tile node rows
                       2 * 32 * hp * 2,    # weights
                       tm * hp * 4,        # y tile
                       2 * 8 * hp * 4)     # stats tile
    return pl.pallas_call(
        _gcn_tile_kernel,
        out_shape=(jax.ShapeDtypeStruct((n_pad, hp), jnp.float32),
                   jax.ShapeDtypeStruct((n_tiles, 2, hp), jnp.float32)),
        grid=(n_tiles,),
        in_specs=[
            pl.BlockSpec((tm, n_pad), lambda i: (i, 0)),   # adjacency rows of this tile
            pl.BlockSpec((n_pad, fa), lambda i: (0, 0)),   # full node table (src side)
            pl.BlockSpec((tm, fa), lambda i: (i, 0)),      # dst-tile node rows (residual)
            pl.BlockSpec((fa, hp), lambda i: (0, 0)),
            pl.BlockSpec((fa, hp), lambda i: (0, 0)),
        ],
        out_specs=(pl.BlockSpec((tm, hp), lambda i: (i, 0)),
                   pl.BlockSpec((1, 2, hp), lambda i: (i, 0, 0))),
        compiler_params=pltpu.CompilerParams(
            dimension_semantics=("parallel",),             # rows are independent -> megacore on v7x
            vmem_limit_bytes=vmem),
    )(adj, x_aug, x_aug, wlin, wres)


def hetero_bn_apply_pallas(y, scale_by_tile, shift_by_tile, tm):
    n_pad, hp = y.shape
    n_tiles = n_pad // tm
    vmem = _vmem_limit(tm * hp * 4, 2 * hp * 4, tm * hp * 2)
    return pl.pallas_call(
        _bn_apply_kernel,
        out_shape=jax.ShapeDtypeStruct((n_pad, hp), jnp.bfloat16),   # bf16: halved writeback
        grid=(n_tiles,),
        in_specs=[
            pl.BlockSpec((tm, hp), lambda i: (i, 0)),
            pl.BlockSpec((1, 1, hp), lambda i: (i, 0, 0)),
            pl.BlockSpec((1, 1, hp), lambda i: (i, 0, 0)),
        ],
        out_specs=pl.BlockSpec((tm, hp), lambda i: (i, 0)),
        compiler_params=pltpu.CompilerParams(
            dimension_semantics=("parallel",), vmem_limit_bytes=vmem),
    )(y, scale_by_tile, shift_by_tile)


# ----------------------------- one-time preparation -----------------------------

def prepare_params(params, node_order):
    """Pre-transpose / fold biases / pad to 128 lanes ONCE, outside the forward."""
    def pad_h(m):
        pad = [(0, 0)] * (m.ndim - 1) + [(0, H_PAD - m.shape[-1])]
        return jnp.pad(m, pad)

    wlin_aug_t = jnp.concatenate([params["W_lin"].T, params["b_lin"][None, :]], axis=0)
    wres_aug_t = jnp.concatenate([params["W_res"].T, params["b_res"][None, :]], axis=0)
    gamma = jnp.stack([params["bn_gamma"][nt] for nt in node_order], axis=0)
    beta = jnp.stack([params["bn_beta"][nt] for nt in node_order], axis=0)
    return {
        "wlin_aug_t": pad_h(wlin_aug_t).astype(jnp.bfloat16),
        "wres_aug_t": pad_h(wres_aug_t).astype(jnp.bfloat16),
        "gamma": pad_h(gamma).astype(jnp.float32),
        "beta": pad_h(beta).astype(jnp.float32),
    }


def prepare_graph(edge_index_dict, node_counts, node_order, tm=DEFAULT_TM):
    """Once per (static) graph: tile-aligned node layout + dense bf16 edge-count adjacency.

    Moved out of the per-call path per perf review (graph structure is static; only
    features change per call).
    """
    assert tm % 8 == 0
    offsets, padded, off = {}, {}, 0
    for nt in node_order:
        n = int(node_counts[nt])
        n_pad = ((n + tm - 1) // tm) * tm       # per-type rows padded to the row tile
        offsets[nt] = off
        padded[nt] = n_pad
        off += n_pad
    n_pad_total = off

    # TODO(synk): for large graphs replace this dense O(N^2) adjacency (and the dense
    #             matmul in kernel A) with a PrefetchScalarGridSpec sparse gather/scatter
    #             path so the N^2 tensor never exists.
    adj = jnp.zeros((n_pad_total, n_pad_total), jnp.float32)
    dst_types = set()
    for (src, _rel, dst), ei in edge_index_dict.items():
        s, d = ei[0], ei[1]
        adj = adj.at[offsets[dst] + d, offsets[src] + s].add(1.0)
        dst_types.add(dst)
    # bf16 represents small integers exactly; multiplicities above 256 would round.
    assert float(adj.max()) <= 256.0, "edge multiplicity too large for exact bf16 adjacency"
    adj = adj.astype(jnp.bfloat16)

    tile_info = [(nt, offsets[nt] // tm, padded[nt] // tm, int(node_counts[nt]), offsets[nt])
                 for nt in node_order]
    return {"adj": adj, "offsets": offsets, "padded": padded, "n_pad_total": n_pad_total,
            "dst_types": dst_types, "tile_info": tile_info, "tm": tm}


# ----------------------------- forward wrapper -----------------------------

def hetero_gcn_layer_forward(x_dict, graph, prepared, node_order, eps=BN_EPS):
    tm = graph["tm"]
    hp = H_PAD

    # Padded global node table.  Trailing column is 1.0 for real rows (folds b_lin via
    # rowsum(A) and b_res directly) and 0.0 for padded rows (whole row zero -> y == 0,
    # so padded rows drop out of the BN statistics without any masking).
    blocks = []
    for nt in node_order:
        x = x_dict[nt]
        n = x.shape[0]
        n_pad = graph["padded"][nt]
        blk = jnp.concatenate([x, jnp.ones((n, 1), x.dtype)], axis=1)
        if n_pad > n:
            blk = jnp.pad(blk, ((0, n_pad - n), (0, 0)))
        blocks.append(blk)
    x_aug = jnp.concatenate(blocks, axis=0).astype(jnp.bfloat16)

    # ---- pass 1: fused aggregation + residual + per-tile BN partial stats ----
    y, stats = hetero_gcn_agg_pallas(
        graph["adj"], x_aug, prepared["wlin_aug_t"], prepared["wres_aug_t"], tm)

    # ---- tiny cross-tile reduction (T x 128 math): per-type BN scale / shift ----
    # Megacore-safe: partial sums come back per tile; divide by the TRUE node count.
    scales, shifts = [], []
    for t, (nt, tile_start, tile_cnt, n_true, off) in enumerate(graph["tile_info"]):
        if tile_cnt == 0 or n_true == 0:
            continue                            # node type with zero nodes: nothing to do
        s = stats[tile_start:tile_start + tile_cnt].sum(axis=0)     # (2, hp)
        inv_n = 1.0 / float(n_true)
        mean = s[0] * inv_n
        var = jnp.maximum(s[1] * inv_n - mean * mean, 0.0)          # biased variance
        scale = prepared["gamma"][t] * jax.lax.rsqrt(var + eps)
        shift = prepared["beta"][t] - mean * scale
        scales.append(jnp.broadcast_to(scale[None, None, :], (tile_cnt, 1, hp)))
        shifts.append(jnp.broadcast_to(shift[None, None, :], (tile_cnt, 1, hp)))
    scale_by_tile = jnp.concatenate(scales, axis=0)
    shift_by_tile = jnp.concatenate(shifts, axis=0)

    # ---- pass 2: normalize + affine, lane-dense bf16 output ----
    out_pad = hetero_bn_apply_pallas(y, scale_by_tile, shift_by_tile, tm)

    # Only dst types that receive edges are emitted (defaultdict behaviour of the module).
    out = {}
    for (nt, tile_start, tile_cnt, n_true, off) in graph["tile_info"]:
        if nt in graph["dst_types"] and n_true > 0:
            out[nt] = out_pad[off:off + n_true, :HIDDEN_FEATS]
    return out


# ----------------------------- pure-JAX f32 reference -----------------------------

def reference_forward(x_dict, edge_index_dict, params):
    h = {k: v @ params["W_lin"].T + params["b_lin"] for k, v in x_dict.items()}
    msg = {}
    for (src, _rel, dst), ei in edge_index_dict.items():
        s, d = ei[0], ei[1]
        m = jnp.zeros((x_dict[dst].shape[0], HIDDEN_FEATS), jnp.float32).at[d].add(h[src][s])
        msg[dst] = msg.get(dst, 0.0) + m
    out = {}
    for dst, m in msg.items():
        res = jax.nn.relu(x_dict[dst] @ params["W_res"].T + params["b_res"])
        y = m + res
        mean = y.mean(axis=0, keepdims=True)
        var = ((y - mean) ** 2).mean(axis=0, keepdims=True)
        y_hat = (y - mean) / jnp.sqrt(var + BN_EPS)
        out[dst] = y_hat * params["bn_gamma"][dst] + params["bn_beta"][dst]
    return out


# ----------------------------- main -----------------------------

if __name__ == "__main__":
    key = jax.random.PRNGKey(0)
    keys = jax.random.split(key, 12)

    n_atoms, n_cohps = 24, 12
    TM = 16   # small row tile here to exercise multi-tile grid, cross-tile BN reduction
              # and per-type row padding; use DEFAULT_TM (256) for real graphs.

    x_dict = {
        "atoms": jax.random.normal(keys[0], (n_atoms, IN_FEATS), jnp.float32),
        "cohps": jax.random.normal(keys[1], (n_cohps, IN_FEATS), jnp.float32),
    }

    edge_index_dict = {
        ("atoms", "bonds", "atoms"): jnp.stack([
            jax.random.randint(keys[2], (36,), 0, n_atoms),
            jax.random.randint(keys[3], (36,), 0, n_atoms)]).astype(jnp.int32),
        ("atoms", "forms", "cohps"): jnp.stack([
            jax.random.randint(keys[4], (24,), 0, n_atoms),
            jax.random.randint(keys[5], (24,), 0, n_cohps)]).astype(jnp.int32),
        ("cohps", "rev_forms", "atoms"): jnp.stack([
            jax.random.randint(keys[6], (24,), 0, n_cohps),
            jax.random.randint(keys[7], (24,), 0, n_atoms)]).astype(jnp.int32),
    }

    # Parameter init (shapes per module __init__); non-trivial b_lin / gamma / beta so the
    # bias-fold and per-type BN plumbing are genuinely exercised by the check.
    xav = (6.0 / (IN_FEATS + HIDDEN_FEATS)) ** 0.5
    kai = 1.0 / (IN_FEATS ** 0.5)
    params = {
        "W_lin": jax.random.uniform(keys[8], (HIDDEN_FEATS, IN_FEATS), jnp.float32, -xav, xav),
        "b_lin": jax.random.uniform(jax.random.PRNGKey(42), (HIDDEN_FEATS,), jnp.float32, -0.1, 0.1),
        "W_res": jax.random.uniform(keys[9], (HIDDEN_FEATS, IN_FEATS), jnp.float32, -kai, kai),
        "b_res": jax.random.uniform(jax.random.PRNGKey(123), (HIDDEN_FEATS,), jnp.float32, -kai, kai),
        "bn_gamma": {"atoms": jax.random.uniform(keys[10], (HIDDEN_FEATS,), jnp.float32, 0.5, 1.5),
                     "cohps": jax.random.uniform(jax.random.PRNGKey(7), (HIDDEN_FEATS,), jnp.float32, 0.5, 1.5)},
        "bn_beta": {"atoms": jax.random.uniform(keys[11], (HIDDEN_FEATS,), jnp.float32, -0.5, 0.5),
                    "cohps": jax.random.uniform(jax.random.PRNGKey(11), (HIDDEN_FEATS,), jnp.float32, -0.5, 0.5)},
    }
    # TODO(synk): Dropout(p=0.0) is an exact identity and is omitted; BatchNorm
    #             running-stat buffer updates (training bookkeeping) are not modeled.

    node_order = list(x_dict.keys())
    node_counts = {nt: x_dict[nt].shape[0] for nt in node_order}
    prepared = prepare_params(params, node_order)
    graph = prepare_graph(edge_index_dict, node_counts, node_order, tm=TM)

    out = hetero_gcn_layer_forward(x_dict, graph, prepared, node_order)
    out = jax.tree_util.tree_map(jax.block_until_ready, out)

    ref = reference_forward(x_dict, edge_index_dict, params)
    for k in ref:
        assert k in out
        assert out[k].shape == (x_dict[k].shape[0], HIDDEN_FEATS)
        err = float(jnp.max(jnp.abs(out[k].astype(jnp.float32) - ref[k])))
        # Tolerance covers bf16 MXU inputs (features, adjacency, both weight matrices,
        # the reassociated intermediate) and the bf16 output cast; all accumulation and
        # every BatchNorm statistic stays in f32.
        assert err < 7.5e-2, f"mismatch for node type {k}: max abs err {err}"

    print("KERNEL_OK")
</pallas_src>

<mosaic_0001>
module attributes {stable_mosaic.version = 11 : i64} {
  func.func @_gcn_tile_kernel(%arg0: i32, %arg1: memref<16x48xbf16, #tpu.memory_space<vmem>>, %arg2: memref<48x17xbf16, #tpu.memory_space<vmem>>, %arg3: memref<16x17xbf16, #tpu.memory_space<vmem>>, %arg4: memref<17x128xbf16, #tpu.memory_space<vmem>>, %arg5: memref<17x128xbf16, #tpu.memory_space<vmem>>, %arg6: memref<16x128xf32, #tpu.memory_space<vmem>>, %arg7: memref<1x2x128xf32, #tpu.memory_space<vmem>>) attributes {dimension_semantics = [#tpu.dimension_semantics<parallel>], iteration_bounds = array<i64: 3>, scalar_prefetch = 0 : i64, scratch_operands = 0 : i64, tpu.core_type = #tpu.core_type<tc>, window_params = [{transform_indices = @transform_0, window_bounds = array<i64: 16, 48>}, {pipeline_mode = #tpu.pipeline_mode<synchronous>, transform_indices = @transform_1, window_bounds = array<i64: 48, 17>}, {transform_indices = @transform_2, window_bounds = array<i64: 16, 17>}, {pipeline_mode = #tpu.pipeline_mode<synchronous>, transform_indices = @transform_3, window_bounds = array<i64: 17, 128>}, {pipeline_mode = #tpu.pipeline_mode<synchronous>, transform_indices = @transform_4, window_bounds = array<i64: 17, 128>}, {transform_indices = @transform_5, window_bounds = array<i64: 16, 128>}, {transform_indices = @transform_6, window_bounds = array<i64: 1, 2, 128>}]} {
    %c0 = arith.constant 0 : index
    %c0_0 = arith.constant 0 : index
    %0 = vector.load %arg1[%c0, %c0_0] : memref<16x48xbf16, #tpu.memory_space<vmem>>, vector<16x48xbf16>
    %c0_1 = arith.constant 0 : index
    %c0_2 = arith.constant 0 : index
    %1 = vector.load %arg2[%c0_1, %c0_2] : memref<48x17xbf16, #tpu.memory_space<vmem>>, vector<48x17xbf16>
    %cst = arith.constant dense<0.000000e+00> : vector<16x17xf32>
    %2 = tpu.matmul %0, %1, %cst {dimension_numbers = #tpu.dot_dimension_numbers<[1], [0], [0], [1], [0, 0, 1, 1], [], []>} : vector<16x48xbf16>, vector<48x17xbf16>, vector<16x17xf32> -> vector<16x17xf32>
    %3 = arith.truncf %2 : vector<16x17xf32> to vector<16x17xbf16>
    %c0_3 = arith.constant 0 : index
    %c0_4 = arith.constant 0 : index
    %4 = vector.load %arg4[%c0_3, %c0_4] : memref<17x128xbf16, #tpu.memory_space<vmem>>, vector<17x128xbf16>
    %cst_5 = arith.constant dense<0.000000e+00> : vector<16x128xf32>
    %5 = tpu.matmul %3, %4, %cst_5 {dimension_numbers = #tpu.dot_dimension_numbers<[1], [0], [0], [1], [0, 0, 1, 1], [], []>} : vector<16x17xbf16>, vector<17x128xbf16>, vector<16x128xf32> -> vector<16x128xf32>
    %c0_6 = arith.constant 0 : index
    %c0_7 = arith.constant 0 : index
    %6 = vector.load %arg3[%c0_6, %c0_7] : memref<16x17xbf16, #tpu.memory_space<vmem>>, vector<16x17xbf16>
    %c0_8 = arith.constant 0 : index
    %c0_9 = arith.constant 0 : index
    %7 = vector.load %arg5[%c0_8, %c0_9] : memref<17x128xbf16, #tpu.memory_space<vmem>>, vector<17x128xbf16>
    %cst_10 = arith.constant dense<0.000000e+00> : vector<16x128xf32>
    %8 = tpu.matmul %6, %7, %cst_10 {dimension_numbers = #tpu.dot_dimension_numbers<[1], [0], [0], [1], [0, 0, 1, 1], [], []>} : vector<16x17xbf16>, vector<17x128xbf16>, vector<16x128xf32> -> vector<16x128xf32>
    %cst_11 = arith.constant 0.000000e+00 : f32
    %9 = vector.broadcast %cst_11 : f32 to vector<16x128xf32>
    %10 = arith.maximumf %8, %9 : vector<16x128xf32>
    %11 = arith.addf %5, %10 : vector<16x128xf32>
    %c0_12 = arith.constant 0 : index
    %c0_13 = arith.constant 0 : index
    %12 = vector.load %arg6[%c0_12, %c0_13] : memref<16x128xf32, #tpu.memory_space<vmem>>, vector<16x128xf32>
    tpu.vector_store %arg6[%c0_12, %c0_13], %11 {strides = array<i32>} : memref<16x128xf32, #tpu.memory_space<vmem>>, vector<16x128xf32>,
    %cst_14 = arith.constant dense<0.000000e+00> : vector<128xf32>
    %13 = vector.multi_reduction <add>, %11, %cst_14 [0] : vector<16x128xf32> to vector<128xf32>
    %14 = vector.shape_cast %13 : vector<128xf32> to vector<1x128xf32>
    %15 = arith.mulf %11, %11 : vector<16x128xf32>
    %cst_15 = arith.constant dense<0.000000e+00> : vector<128xf32>
    %16 = vector.multi_reduction <add>, %15, %cst_15 [0] : vector<16x128xf32> to vector<128xf32>
    %17 = vector.shape_cast %16 : vector<128xf32> to vector<1x128xf32>
    %18 = tpu.concatenate %14, %17 in 0 : vector<1x128xf32>, vector<1x128xf32> -> vector<2x128xf32>
    %19 = vector.shape_cast %18 : vector<2x128xf32> to vector<1x2x128xf32>
    %c0_16 = arith.constant 0 : index
    %c0_17 = arith.constant 0 : index
    %c0_18 = arith.constant 0 : index
    %20 = vector.load %arg7[%c0_16, %c0_17, %c0_18] : memref<1x2x128xf32, #tpu.memory_space<vmem>>, vector<1x2x128xf32>
    tpu.vector_store %arg7[%c0_16, %c0_17, %c0_18], %19 {strides = array<i32>} : memref<1x2x128xf32, #tpu.memory_space<vmem>>, vector<1x2x128xf32>,
    return
  }
  func.func @transform_0(%arg0: i32) -> (i32, i32) {
    %c0_i32 = arith.constant 0 : i32
    %c0_i32_0 = arith.constant 0 : i32
    return %arg0, %c0_i32 : i32, i32
  }
  func.func @transform_1(%arg0: i32) -> (i32, i32) {
    %c0_i32 = arith.constant 0 : i32
    %c0_i32_0 = arith.constant 0 : i32
    %c0_i32_1 = arith.constant 0 : i32
    return %c0_i32, %c0_i32_0 : i32, i32
  }
  func.func @transform_2(%arg0: i32) -> (i32, i32) {
    %c0_i32 = arith.constant 0 : i32
    %c0_i32_0 = arith.constant 0 : i32
    return %arg0, %c0_i32 : i32, i32
  }
  func.func @transform_3(%arg0: i32) -> (i32, i32) {
    %c0_i32 = arith.constant 0 : i32
    %c0_i32_0 = arith.constant 0 : i32
    %c0_i32_1 = arith.constant 0 : i32
    return %c0_i32, %c0_i32_0 : i32, i32
  }
  func.func @transform_4(%arg0: i32) -> (i32, i32) {
    %c0_i32 = arith.constant 0 : i32
    %c0_i32_0 = arith.constant 0 : i32
    %c0_i32_1 = arith.constant 0 : i32
    return %c0_i32, %c0_i32_0 : i32, i32
  }
  func.func @transform_5(%arg0: i32) -> (i32, i32) {
    %c0_i32 = arith.constant 0 : i32
    %c0_i32_0 = arith.constant 0 : i32
    return %arg0, %c0_i32 : i32, i32
  }
  func.func @transform_6(%arg0: i32) -> (i32, i32, i32) {
    %c0_i32 = arith.constant 0 : i32
    %c0_i32_0 = arith.constant 0 : i32
    %c0_i32_1 = arith.constant 0 : i32
    return %arg0, %c0_i32, %c0_i32_0 : i32, i32, i32
  }
}

</mosaic_0001>

<llo_original>
// kernel: tpu_custom_call.1
$region0: #{tpu_custom_call.1}
  #allocation0 [shape = 'u32[]', space=smem, size = 0x4, offset = 0x4, fixed_abs, tag = 'smem constant byte address 0x4 - core index']
  #allocation1 [shape = 'u32[144,128]{1,0:T(1,128)}', space=vmem, size = 0x12000, scoped, tag = 'internal scratch']
  %s0 = inlined_call_operand.vmem [shape: bf16[48,48], index: 0, kind: input, shape index: {}]
  %s1 = inlined_call_operand.vmem [shape: bf16[48,17], index: 1, kind: input, shape index: {}]
  %s2 = inlined_call_operand.vmem [shape: bf16[48,17], index: 2, kind: input, shape index: {}]
  %s3 = inlined_call_operand.vmem [shape: bf16[17,128], index: 3, kind: input, shape index: {}]
  %s4 = inlined_call_operand.vmem [shape: bf16[17,128], index: 4, kind: input, shape index: {}]
  %s5 = inlined_call_operand.hbm [shape: f32[48,128], index: 5, kind: output, shape index: {0}]
  %s6 = inlined_call_operand.hbm [shape: f32[3,2,128], index: 6, kind: output, shape index: {1}]
  %7 = xla_tuple %s5, %s6
  %s8 = sld [smem:[#allocation0]]
  $region61: #{tpu_custom_call.1} parent=0
    _
  %s10 = ssub.s32 1, %s8
  %s11 = scalar_select 0, %s10, %s8
  $region1: #{tpu_custom_call.1} parent=0
    #allocation2 [shape = 'u8[16384]{0}', space=vmem, size = 0x4000, scoped, tag = 'output window, operand 0']
    #allocation3 [shape = 's32[2]{0}', space=sflag, size = 0x8, scoped, tag = 'scoped memory for tpu_custom_call.1']
    #allocation4 [shape = 'u8[2048]{0}', space=vmem, size = 0x800, scoped, tag = 'output window, operand 1']
    #allocation5 [shape = 's32[2]{0}', space=sflag, size = 0x8, scoped, tag = 'scoped memory for tpu_custom_call.1']
    %12 = vsyncpa [#allocation3], 0
    %s13 = scalar_lea.sflag [#allocation3], 1
    %14 = vsyncpa %s13, 0
    %15 = vsyncpa [#allocation5], 0
    %s16 = scalar_lea.sflag [#allocation5], 1
    %17 = vsyncpa %s16, 0
    loop: start=0, step=1, limit=5
    $region2: #{tpu_custom_call.1} parent=1 // loop_pre_header
      _
    $region3: #{tpu_custom_call.1} parent=1 // loop_header
      %s19 = sphi 0, %s23
      %p20 = scmp.ge.s32.totalorder %s19, 5
      %s29 = sphi 0, %s31
      %s32 = sphi 0, %s29
      %s33 = sphi 0, %s32
      %s49 = sphi 0, %s33
      %s53 = sphi 0, %s53
      %s55 = sphi 0, %s53
      %s56 = sphi 0, %s55
      %s70 = sphi 0, %s56
      %s76 = sphi 0, %s78
      %s79 = sphi 0, %s76
      %s80 = sphi 0, %s79
      %s96 = sphi 0, %s80
      %s100 = sphi 0, %s100
      %s102 = sphi 0, %s100
      %s103 = sphi 0, %s102
      %s117 = sphi 0, %s103
      %s121 = sphi 0, %s121
      %s123 = sphi 0, %s121
      %s124 = sphi 0, %s123
      %s138 = sphi 0, %s124
      %s144 = sphi 0, %s146
      %s147 = sphi 0, %s144
      %s148 = sphi 0, %s147
      %s164 = sphi 0, %s148
      %s170 = sphi 0, %s172
      %s173 = sphi 0, %s170
      %s174 = sphi 0, %s173
      %s190 = sphi 0, %s174
    $region4: #{tpu_custom_call.1} parent=1 // loop_header_branch
      %22 = sbr.rel (%p20) target = $region8
    $region5: #{tpu_custom_call.1} parent=1 // loop_body
      %s24 = ssub.s32 %s19, 1
      %s25 = ssub.s32 %s19, 2
      %s26 = sadd.s32 %s19, 1
      %s27 = ssub.s32 %s19, %s26
      %p28 = scmp.eq.s32.totalorder %s27, 0
      %s30 = sadd.s32 %s29, 1
      %s31 = scalar_select %p28, %s29, %s30
      %p34 = pneg %p28
      %p35 = scmp.eq.s32.totalorder %s19, 2
      %p36 = por %p34, %p35
      %p37 = scmp.ne.s32.totalorder %s29, %s32
      %p38 = scmp.eq.s32.totalorder %s19, 0
      %p39 = por %p37, %p38
      %p40 = scmp.ne.s32.totalorder %s29, %s32
      %p41 = scmp.eq.s32.totalorder %s24, 2
      %p42 = por %p40, %p41
      %p43 = scmp.ne.s32.totalorder %s32, %s33
      %p44 = scmp.eq.s32.totalorder %s24, 0
      %p45 = por %p43, %p44
      %p46 = scmp.ne.s32.totalorder %s32, %s33
      %p47 = scmp.eq.s32.totalorder %s25, 2
      %p48 = por %p46, %p47
      %p50 = scmp.ne.s32.totalorder %s33, %s49
      %p51 = scmp.eq.s32.totalorder %s25, 0
      %p52 = por %p50, %p51
      %s54 = sadd.s32 %s53, 1
      %p57 = scmp.eq.s32.totalorder %s19, 2
      %p58 = scmp.ne.s32.totalorder %s53, %s55
      %p59 = scmp.eq.s32.totalorder %s19, 0
      %p60 = por %p58, %p59
      %p61 = scmp.ne.s32.totalorder %s53, %s55
      %p62 = scmp.eq.s32.totalorder %s24, 2
      %p63 = por %p61, %p62
      %p64 = scmp.ne.s32.totalorder %s55, %s56
      %p65 = scmp.eq.s32.totalorder %s24, 0
      %p66 = por %p64, %p65
      %p67 = scmp.ne.s32.totalorder %s55, %s56
      %p68 = scmp.eq.s32.totalorder %s25, 2
      %p69 = por %p67, %p68
      %p71 = scmp.ne.s32.totalorder %s56, %s70
      %p72 = scmp.eq.s32.totalorder %s25, 0
      %p73 = por %p71, %p72
      %s74 = ssub.s32 %s19, %s26
      %p75 = scmp.eq.s32.totalorder %s74, 0
      %s77 = sadd.s32 %s76, 1
      %s78 = scalar_select %p75, %s76, %s77
      %p81 = pneg %p75
      %p82 = scmp.eq.s32.totalorder %s19, 2
      %p83 = por %p81, %p82
      %p84 = scmp.ne.s32.totalorder %s76, %s79
      %p85 = scmp.eq.s32.totalorder %s19, 0
      %p86 = por %p84, %p85
      %p87 = scmp.ne.s32.totalorder %s76, %s79
      %p88 = scmp.eq.s32.totalorder %s24, 2
      %p89 = por %p87, %p88
      %p90 = scmp.ne.s32.totalorder %s79, %s80
      %p91 = scmp.eq.s32.totalorder %s24, 0
      %p92 = por %p90, %p91
      %p93 = scmp.ne.s32.totalorder %s79, %s80
      %p94 = scmp.eq.s32.totalorder %s25, 2
      %p95 = por %p93, %p94
      %p97 = scmp.ne.s32.totalorder %s80, %s96
      %p98 = scmp.eq.s32.totalorder %s25, 0
      %p99 = por %p97, %p98
      %s101 = sadd.s32 %s100, 1
      %p104 = scmp.eq.s32.totalorder %s19, 2
      %p105 = scmp.ne.s32.totalorder %s100, %s102
      %p106 = scmp.eq.s32.totalorder %s19, 0
      %p107 = por %p105, %p106
      %p108 = scmp.ne.s32.totalorder %s100, %s102
      %p109 = scmp.eq.s32.totalorder %s24, 2
      %p110 = por %p108, %p109
      %p111 = scmp.ne.s32.totalorder %s102, %s103
      %p112 = scmp.eq.s32.totalorder %s24, 0
      %p113 = por %p111, %p112
      %p114 = scmp.ne.s32.totalorder %s102, %s103
      %p115 = scmp.eq.s32.totalorder %s25, 2
      %p116 = por %p114, %p115
      %p118 = scmp.ne.s32.totalorder %s103, %s117
      %p119 = scmp.eq.s32.totalorder %s25, 0
      %p120 = por %p118, %p119
      %s122 = sadd.s32 %s121, 1
      %p125 = scmp.eq.s32.totalorder %s19, 2
      %p126 = scmp.ne.s32.totalorder %s121, %s123
      %p127 = scmp.eq.s32.totalorder %s19, 0
      %p128 = por %p126, %p127
      %p129 = scmp.ne.s32.totalorder %s121, %s123
      %p130 = scmp.eq.s32.totalorder %s24, 2
      %p131 = por %p129, %p130
      %p132 = scmp.ne.s32.totalorder %s123, %s124
      %p133 = scmp.eq.s32.totalorder %s24, 0
      %p134 = por %p132, %p133
      %p135 = scmp.ne.s32.totalorder %s123, %s124
      %p136 = scmp.eq.s32.totalorder %s25, 2
      %p137 = por %p135, %p136
      %p139 = scmp.ne.s32.totalorder %s124, %s138
      %p140 = scmp.eq.s32.totalorder %s25, 0
      %p141 = por %p139, %p140
      %s142 = ssub.s32 %s19, %s26
      %p143 = scmp.eq.s32.totalorder %s142, 0
      %s145 = sadd.s32 %s144, 1
      %s146 = scalar_select %p143, %s144, %s145
      %p149 = pneg %p143
      %p150 = scmp.eq.s32.totalorder %s19, 2
      %p151 = por %p149, %p150
      %p152 = scmp.ne.s32.totalorder %s144, %s147
      %p153 = scmp.eq.s32.totalorder %s19, 0
      %p154 = por %p152, %p153
      %p155 = scmp.ne.s32.totalorder %s144, %s147
      %p156 = scmp.eq.s32.totalorder %s24, 2
      %p157 = por %p155, %p156
      %p158 = scmp.ne.s32.totalorder %s147, %s148
      %p159 = scmp.eq.s32.totalorder %s24, 0
      %p160 = por %p158, %p159
      %p161 = scmp.ne.s32.totalorder %s147, %s148
      %p162 = scmp.eq.s32.totalorder %s25, 2
      %p163 = por %p161, %p162
      %p165 = scmp.ne.s32.totalorder %s148, %s164
      %p166 = scmp.eq.s32.totalorder %s25, 0
      %p167 = por %p165, %p166
      %s168 = ssub.s32 %s19, %s26
      %p169 = scmp.eq.s32.totalorder %s168, 0
      %s171 = sadd.s32 %s170, 1
      %s172 = scalar_select %p169, %s170, %s171
      %p175 = pneg %p169
      %p176 = scmp.eq.s32.totalorder %s19, 2
      %p177 = por %p175, %p176
      %p178 = scmp.ne.s32.totalorder %s170, %s173
      %p179 = scmp.eq.s32.totalorder %s19, 0
      %p180 = por %p178, %p179
      %p181 = scmp.ne.s32.totalorder %s170, %s173
      %p182 = scmp.eq.s32.totalorder %s24, 2
      %p183 = por %p181, %p182
      %p184 = scmp.ne.s32.totalorder %s173, %s174
      %p185 = scmp.eq.s32.totalorder %s24, 0
      %p186 = por %p184, %p185
      %p187 = scmp.ne.s32.totalorder %s173, %s174
      %p188 = scmp.eq.s32.totalorder %s25, 2
      %p189 = por %p187, %p188
      %p191 = scmp.ne.s32.totalorder %s174, %s190
      %p192 = scmp.eq.s32.totalorder %s25, 0
      %p193 = por %p191, %p192
      %p194 = scmp.le.s32.totalorder 1, %s19
      %p195 = scmp.lt.s32.totalorder %s19, 4
      %p196 = pnand %p194, %p195
      %p197 = pneg %p196
      // Predicated region
      $region9: #{tpu_custom_call.1} parent=5 // pred_check
        _
      $region10: #{tpu_custom_call.1} parent=5 // pred_check_branch
        %199 = sbr.rel (%p196) target = $region12
      $region11: #{tpu_custom_call.1} parent=5 // pred_region
        %s200 = ssub.s32 %s19, 1
        // Predicated region
        $region13: #{tpu_custom_call.1} parent=11 // pred_check
          %p201 = pneg %p66
        $region14: #{tpu_custom_call.1} parent=11 // pred_check_branch
          %203 = sbr.rel (%p201) target = $region16
        $region15: #{tpu_custom_call.1} parent=11 // pred_region
          _
        $region16: #{tpu_custom_call.1} parent=11 // pred_fallthru
          _
        // Predicated region
        $region17: #{tpu_custom_call.1} parent=11 // pred_check
          %p204 = pneg %p113
        $region18: #{tpu_custom_call.1} parent=11 // pred_check_branch
          %206 = sbr.rel (%p204) target = $region20
        $region19: #{tpu_custom_call.1} parent=11 // pred_region
          _
        $region20: #{tpu_custom_call.1} parent=11 // pred_fallthru
          _
        // Predicated region
        $region21: #{tpu_custom_call.1} parent=11 // pred_check
          %p207 = pneg %p134
        $region22: #{tpu_custom_call.1} parent=11 // pred_check_branch
          %209 = sbr.rel (%p207) target = $region24
        $region23: #{tpu_custom_call.1} parent=11 // pred_region
          _
        $region24: #{tpu_custom_call.1} parent=11 // pred_fallthru
          _
      $region12: #{tpu_custom_call.1} parent=5 // pred_fallthru
        _
      %p210 = scmp.lt.s32.totalorder %s19, 3
      // Predicated region
      $region25: #{tpu_custom_call.1} parent=5 // pred_check
        %p211 = pneg %p210
      $region26: #{tpu_custom_call.1} parent=5 // pred_check_branch
        %213 = sbr.rel (%p211) target = $region28
      $region27: #{tpu_custom_call.1} parent=5 // pred_region
        // Predicated region
        $region29: #{tpu_custom_call.1} parent=27 // pred_check
          %p214 = pneg %p39
        $region30: #{tpu_custom_call.1} parent=27 // pred_check_branch
          %216 = sbr.rel (%p214) target = $region32
        $region31: #{tpu_custom_call.1} parent=27 // pred_region
          %s217 = smul.u32 2, %s19
          %p218 = scmp.lt.s32.totalorder %s217, 5
          %s219 = scalar_select %p218, %s217, 5
          %s220 = smul.addr %s219, 4
          %s221 = scalar_lea.vmem %s0, %s220
          %s222 = smul.u32 2, %s19
        $region32: #{tpu_custom_call.1} parent=27 // pred_fallthru
          _
        // Predicated region
        $region33: #{tpu_custom_call.1} parent=27 // pred_check
          %p223 = pneg %p86
        $region34: #{tpu_custom_call.1} parent=27 // pred_check_branch
          %225 = sbr.rel (%p223) target = $region36
        $region35: #{tpu_custom_call.1} parent=27 // pred_region
          %s226 = smul.u32 2, %s19
          %p227 = scmp.lt.s32.totalorder %s226, 5
          %s228 = scalar_select %p227, %s226, 5
          %s229 = smul.addr %s228, 4
          %s230 = scalar_lea.vmem %s2, %s229
          %s231 = smul.u32 2, %s19
        $region36: #{tpu_custom_call.1} parent=27 // pred_fallthru
          _
      $region28: #{tpu_custom_call.1} parent=5 // pred_fallthru
        _
      %p232 = scmp.le.s32.totalorder 1, %s19
      %p233 = scmp.lt.s32.totalorder %s19, 4
      %p234 = pnand %p232, %p233
      %p235 = pneg %p234
      // Predicated region
      $region37: #{tpu_custom_call.1} parent=5 // pred_check
        _
      $region38: #{tpu_custom_call.1} parent=5 // pred_check_branch
        %237 = sbr.rel (%p234) target = $region40
      $region39: #{tpu_custom_call.1} parent=5 // pred_region
        %s238 = ssub.s32 %s19, 1
        %s239 = smul.u32 2, %s24
        %p240 = scmp.lt.s32.totalorder %s239, 5
        %s241 = scalar_select %p240, %s239, 5
        %s242 = smul.addr %s241, 4
        %s243 = scalar_lea.vmem %s0, %s242
        %p244 = pneg %p45
        %p245 = pneg %p42
        %p246 = pneg %p66
        %p247 = pneg %p63
        %s248 = smul.u32 2, %s24
        %p249 = scmp.lt.s32.totalorder %s248, 5
        %s250 = scalar_select %p249, %s248, 5
        %s251 = smul.addr %s250, 4
        %s252 = scalar_lea.vmem %s2, %s251
        %p253 = pneg %p92
        %p254 = pneg %p89
        %p255 = pneg %p113
        %p256 = pneg %p110
        %p257 = pneg %p134
        %p258 = pneg %p131
        %p259 = pneg %p160
        %p260 = pneg %p157
        %s261 = sand.u32 %s147, 1
        %s262 = scalar_lea.sflag [#allocation3], %s261
        %s263 = sand.u32 %s147, 1
        %s264 = smul.addr %s263, 16
        %s265 = scalar_lea.vmem [#allocation2], %s264
        %p266 = pneg %p186
        %p267 = pneg %p183
        %s268 = sand.u32 %s173, 1
        %s269 = scalar_lea.sflag [#allocation5], %s268
        %s270 = sand.u32 %s173, 1
        %s271 = smul.addr %s270, 2
        %s272 = scalar_lea.vmem [#allocation4], %s271
        %s273 = smul.u32 2, %s24
        %p274 = scmp.lt.s32.totalorder %s273, 5
        %s275 = scalar_select %p274, %s273, 5
        %s276 = smul.addr %s275, 4
        %s277 = scalar_lea.vmem %s0, %s276
        %s278 = smul.u32 2, %s24
        %s279 = smul.u32 2, %s24
        %p280 = scmp.lt.s32.totalorder %s279, 5
        %s281 = scalar_select %p280, %s279, 5
        %s282 = smul.addr %s281, 4
        %s283 = scalar_lea.vmem %s2, %s282
        %s284 = smul.u32 2, %s24
        %s285 = smul.u32 2, %s24
        %v287 = vld [vmem:[%s277] sm:$0xf]
        %v288 = vld [vmem:[%s277 + $0x4] sm:$0xf]
        %v289 = vld [vmem:[%s1] sm:$0xf]
        %v290 = vld [vmem:[%s1 + $0x4] sm:$0xf]
        %v291 = vld [vmem:[%s1 + $0x8] sm:$0xf]
        %v292 = vld [vmem:[%s1 + $0xc] sm:$0xf]
        %v293 = vld [vmem:[%s1 + $0x10] sm:$0xf]
        %v294 = vld [vmem:[%s1 + $0x14] sm:$0xf]
        %v297 = vunpack.c.l.b16 %v287
        %v298 = vunpack.c.l.b16 %v288
        %v299 = vpack.c.b16 %v298, %v297
        %v306 = vunpack.c.l.b16 %v289
        %v307 = vunpack.c.l.b16 %v290
        %v308 = vunpack.c.l.b16 %v291
        %v309 = vunpack.c.l.b16 %v292
        %v310 = vunpack.c.l.b16 %v293
        %v311 = vunpack.c.l.b16 %v294
        %v312 = vpack.c.b16 %v307, %v306
        %v313 = vpack.c.b16 %v309, %v308
        %v314 = vpack.c.b16 %v311, %v310
        %vm318 = vcmask 392192
        %v320 = vsel %vm318, %v299, 0
        %322 = vmatprep.subr.bf16.mxu0 0
        %323 = vmatpush1.bf16.msra.mxu0 0
        %324 = vmatprep.subr.bf16.mxu0 0
        %325 = vmatpush1.bf16.msra.mxu0 0
        %326 = vmatprep.subr.bf16.mxu0 0
        %327 = vmatpush1.bf16.msra.mxu0 0
        %328 = vmatprep.subr.bf16.mxu0 0
        %329 = vmatpush1.bf16.msra.mxu0 0
        %330 = vmatprep.subr.bf16.mxu0 0
        %331 = vmatpush1.bf16.msra.mxu0 0
        %332 = vmatprep.subr.bf16.mxu0 0
        %333 = vmatpush1.bf16.msra.mxu0 %v314
        %334 = vmatprep.subr.bf16.mxu0 0
        %335 = vmatpush1.bf16.msra.mxu0 %v313
        %336 = vmatprep.subr.bf16.mxu0 0
        %337 = vmatpush1.bf16.msra.mxu0 %v312
        %338 = vmatprep.subr.bf16.mxu0 0
        %339 = vmatpush2.bf16.msra.mxu0 0
        %340 = vmatprep.subr.bf16.mxu0 0
        %341 = vmatpush2.bf16.msra.mxu0 0
        %342 = vmatprep.subr.bf16.mxu0 0
        %343 = vmatpush2.bf16.msra.mxu0 0
        %344 = vmatprep.subr.bf16.mxu0 0
        %345 = vmatpush2.bf16.msra.mxu0 0
        %346 = vmatprep.subr.bf16.mxu0 0
        %347 = vmatpush2.bf16.msra.mxu0 0
        %348 = vmatprep.subr.bf16.mxu0 0
        %349 = vmatpush2.bf16.msra.mxu0 0
        %350 = vmatprep.subr.bf16.mxu0 0
        %351 = vmatpush2.bf16.msra.mxu0 0
        %352 = vmatprep.subr.bf16.mxu0 0
        %353 = vmatpush2.bf16.msra.mxu0 0
        %354 = vmatprep.mubr.bf16.mxu0 0
        %355 = vmatmul.mubr.bf16.gmra.mxu0 %v320
        %v356 = vpop.f32.mrf.mxu0
        %v357 = vadd.f32 0.0, %v356
        %v358 = vpop.f32.mrf.mxu0
        %v359 = vpop.f32.mrf.mxu0
        %v360 = vadd.f32 0.0, %v359
        %v361 = vpop.f32.mrf.mxu0
        %362 = vdwg.mxu0
        %v363 = vpack.c.bf16 %v360, %v357
        %v364 = vld [vmem:[%s3] sm:$0xf]
        %v365 = vld [vmem:[%s3 + $0x4] sm:$0xf]
        %v366 = vld [vmem:[%s3 + $0x8] sm:$0x1]
        %v367 = vld [vmem:[%s283] sm:$0xf]
        %v368 = vld [vmem:[%s283 + $0x4] sm:$0xf]
        %v369 = vld [vmem:[%s4] sm:$0xf]
        %v370 = vld [vmem:[%s4 + $0x4] sm:$0xf]
        %v371 = vld [vmem:[%s4 + $0x8] sm:$0x1]
        %v374 = vunpack.c.l.b16 %v367
        %v375 = vunpack.c.l.b16 %v368
        %v376 = vpack.c.b16 %v375, %v374
        %v380 = vunpack.c.l.b16 %v369
        %v381 = vunpack.c.l.b16 %v370
        %v382 = vunpack.c.l.b16 %v371
        %v383 = vpack.c.b16 %v381, %v380
        %v384 = vpack.c.b16 %v382, %v382
        %vm386 = vcmask 138240
        %v388 = vsel %vm386, %v376, 0
        %vm390 = vcmask 1040384
        %v391 = vsel 0, 4294967295, 65535
        %v392 = vsel %vm390, %v391, 0
        %v394 = vand.u32 %v384, %v392
        %396 = vmatprep.subr.bf16.mxu0 0
        %397 = vmatpush1.bf16.msra.mxu0 0
        %398 = vmatprep.subr.bf16.mxu0 0
        %399 = vmatpush1.bf16.msra.mxu0 0
        %400 = vmatprep.subr.bf16.mxu0 0
        %401 = vmatpush1.bf16.msra.mxu0 0
        %402 = vmatprep.subr.bf16.mxu0 0
        %403 = vmatpush1.bf16.msra.mxu0 0
        %404 = vmatprep.subr.bf16.mxu0 0
        %405 = vmatpush1.bf16.msra.mxu0 0
        %406 = vmatprep.subr.bf16.mxu0 0
        %407 = vmatpush1.bf16.msra.mxu0 0
        %408 = vmatprep.subr.bf16.mxu0 0
        %409 = vmatpush1.bf16.msra.mxu0 %v394
        %410 = vmatprep.subr.bf16.mxu0 0
        %411 = vmatpush1.bf16.msra.mxu0 %v383
        %412 = vmatprep.subr.bf16.mxu0 0
        %413 = vmatpush2.bf16.msra.mxu0 0
        %414 = vmatprep.subr.bf16.mxu0 0
        %415 = vmatpush2.bf16.msra.mxu0 0
        %416 = vmatprep.subr.bf16.mxu0 0
        %417 = vmatpush2.bf16.msra.mxu0 0
        %418 = vmatprep.subr.bf16.mxu0 0
        %419 = vmatpush2.bf16.msra.mxu0 0
        %420 = vmatprep.subr.bf16.mxu0 0
        %421 = vmatpush2.bf16.msra.mxu0 0
        %422 = vmatprep.subr.bf16.mxu0 0
        %423 = vmatpush2.bf16.msra.mxu0 0
        %424 = vmatprep.subr.bf16.mxu0 0
        %425 = vmatpush2.bf16.msra.mxu0 0
        %426 = vmatprep.subr.bf16.mxu0 0
        %427 = vmatpush2.bf16.msra.mxu0 0
        %428 = vmatprep.mubr.bf16.mxu0 0
        %429 = vmatmul.mubr.bf16.gmra.mxu0 %v388
        %v430 = vpop.f32.mrf.mxu0
        %v431 = vadd.f32 0.0, %v430
        %v432 = vpop.f32.mrf.mxu0
        %v433 = vpop.f32.mrf.mxu0
        %v434 = vadd.f32 0.0, %v433
        %v435 = vpop.f32.mrf.mxu0
        %436 = vdwg.mxu0
        %v437 = vmax.f32 %v431, 0.0
        %v438 = vmax.f32 %v434, 0.0
        %v442 = vunpack.c.l.b16 %v364
        %v443 = vunpack.c.l.b16 %v365
        %v444 = vunpack.c.l.b16 %v366
        %v445 = vpack.c.b16 %v443, %v442
        %v446 = vpack.c.b16 %v444, %v444
        %v449 = vsel %vm386, %v363, 0
        %v452 = vand.u32 %v446, %v392
        %454 = vmatprep.subr.bf16.mxu0 0
        %455 = vmatpush1.bf16.msra.mxu0 0
        %456 = vmatprep.subr.bf16.mxu0 0
        %457 = vmatpush1.bf16.msra.mxu0 0
        %458 = vmatprep.subr.bf16.mxu0 0
        %459 = vmatpush1.bf16.msra.mxu0 0
        %460 = vmatprep.subr.bf16.mxu0 0
        %461 = vmatpush1.bf16.msra.mxu0 0
        %462 = vmatprep.subr.bf16.mxu0 0
        %463 = vmatpush1.bf16.msra.mxu0 0
        %464 = vmatprep.subr.bf16.mxu0 0
        %465 = vmatpush1.bf16.msra.mxu0 0
        %466 = vmatprep.subr.bf16.mxu0 0
        %467 = vmatpush1.bf16.msra.mxu0 %v452
        %468 = vmatprep.subr.bf16.mxu0 0
        %469 = vmatpush1.bf16.msra.mxu0 %v445
        %470 = vmatprep.subr.bf16.mxu0 0
        %471 = vmatpush2.bf16.msra.mxu0 0
        %472 = vmatprep.subr.bf16.mxu0 0
        %473 = vmatpush2.bf16.msra.mxu0 0
        %474 = vmatprep.subr.bf16.mxu0 0
        %475 = vmatpush2.bf16.msra.mxu0 0
        %476 = vmatprep.subr.bf16.mxu0 0
        %477 = vmatpush2.bf16.msra.mxu0 0
        %478 = vmatprep.subr.bf16.mxu0 0
        %479 = vmatpush2.bf16.msra.mxu0 0
        %480 = vmatprep.subr.bf16.mxu0 0
        %481 = vmatpush2.bf16.msra.mxu0 0
        %482 = vmatprep.subr.bf16.mxu0 0
        %483 = vmatpush2.bf16.msra.mxu0 0
        %484 = vmatprep.subr.bf16.mxu0 0
        %485 = vmatpush2.bf16.msra.mxu0 0
        %486 = vmatprep.mubr.bf16.mxu0 0
        %487 = vmatmul.mubr.bf16.gmra.mxu0 %v449
        %v488 = vpop.f32.mrf.mxu0
        %v489 = vadd.f32 %v437, %v488
        %v490 = vpop.f32.mrf.mxu0
        %v491 = vpop.f32.mrf.mxu0
        %v492 = vadd.f32 %v438, %v491
        %v493 = vpop.f32.mrf.mxu0
        %494 = vdwg.mxu0
        %495 = vst [vmem:[%s265] sm:$0xff] %v489
        %496 = vst [vmem:[%s265 + $0x8] sm:$0xff] %v492
        %v497 = vadd.f32 %v489, %v492
        %v498 = vrot.slane %v497, 4
        %v499 = vadd.f32 %v497, %v498
        %v500 = vrot.slane %v499, 2
        %v501 = vadd.f32 %v499, %v500
        %v502 = vrot.slane %v501, 1
        %v503 = vadd.f32 %v501, %v502
        %v504 = vmul.f32 %v489, %v489
        %v505 = vmul.f32 %v492, %v492
        %v506 = vadd.f32 %v504, %v505
        %v507 = vrot.slane %v506, 4
        %v508 = vadd.f32 %v506, %v507
        %v509 = vrot.slane %v508, 2
        %v510 = vadd.f32 %v508, %v509
        %v511 = vrot.slane %v510, 1
        %v512 = vadd.f32 %v510, %v511
        %v513 = vsel %vm390, %v503, %v512
        %514 = vst [vmem:[%s272] sm:$0x3] %v513
        %s515 = sand.u32 %s147, 1
        %s516 = scalar_lea.sflag [#allocation3], %s515
        %s517 = sand.u32 %s147, 1
        %s518 = smul.addr %s517, 16
        %s519 = scalar_lea.vmem [#allocation2], %s518
        %s520 = sand.u32 %s173, 1
        %s521 = scalar_lea.sflag [#allocation5], %s520
        %s522 = sand.u32 %s173, 1
        %s523 = smul.addr %s522, 2
        %s524 = scalar_lea.vmem [#allocation4], %s523
        // Predicated region
        $region41: #{tpu_custom_call.1} parent=39 // pred_check
          %p525 = pneg %p157
        $region42: #{tpu_custom_call.1} parent=39 // pred_check_branch
          %527 = sbr.rel (%p525) target = $region44
        $region43: #{tpu_custom_call.1} parent=39 // pred_region
          %s528 = smul.u32 2, %s24
          %s530 = ssub.s32 256, 256
          %531 = vsyncadd %s516, %s530
          %s532 = smul.addr %s528, 128
          %s533 = scalar_lea.hbm %s5, %s532
          %s534 = sshll.u32 %s519, 4
          %s535 = int_to_ptr.vmem [resolvable:$true] %s534
          %540 = dma.vmem_to_hbm [thread:$0]  %s535, 256, %s533, %s516, 128, 128, 8
        $region44: #{tpu_custom_call.1} parent=39 // pred_fallthru
          _
        // Predicated region
        $region45: #{tpu_custom_call.1} parent=39 // pred_check
          %p541 = pneg %p183
        $region46: #{tpu_custom_call.1} parent=39 // pred_check_branch
          %543 = sbr.rel (%p541) target = $region48
        $region47: #{tpu_custom_call.1} parent=39 // pred_region
          %s545 = ssub.s32 32, 32
          %546 = vsyncadd %s521, %s545
          %s547 = smul.addr %s24, 32
          %s548 = scalar_lea.hbm %s6, %s547
          %s550 = sshll.u32 %s524, 4
          %s551 = int_to_ptr.vmem [resolvable:$true] %s550
          %553 = dma.vmem_to_hbm [thread:$0]  %s551, 32, %s548, %s521
        $region48: #{tpu_custom_call.1} parent=39 // pred_fallthru
          _
      $region40: #{tpu_custom_call.1} parent=5 // pred_fallthru
        _
      %p554 = scmp.le.s32.totalorder 2, %s19
      // Predicated region
      $region49: #{tpu_custom_call.1} parent=5 // pred_check
        %p555 = pneg %p554
      $region50: #{tpu_custom_call.1} parent=5 // pred_check_branch
        %557 = sbr.rel (%p555) target = $region52
      $region51: #{tpu_custom_call.1} parent=5 // pred_region
        %s558 = ssub.s32 %s19, 2
        // Predicated region
        $region53: #{tpu_custom_call.1} parent=51 // pred_check
          %p559 = pneg %p163
        $region54: #{tpu_custom_call.1} parent=51 // pred_check_branch
          %561 = sbr.rel (%p559) target = $region56
        $region55: #{tpu_custom_call.1} parent=51 // pred_region
          %s562 = sand.u32 %s148, 1
          %s563 = scalar_lea.sflag [#allocation3], %s562
          %s564 = sand.u32 %s148, 1
          %s565 = smul.addr %s564, 16
          %s566 = scalar_lea.vmem [#allocation2], %s565
          %567 = dma.done %s563, 256
        $region56: #{tpu_custom_call.1} parent=51 // pred_fallthru
          _
        // Predicated region
        $region57: #{tpu_custom_call.1} parent=51 // pred_check
          %p568 = pneg %p189
        $region58: #{tpu_custom_call.1} parent=51 // pred_check_branch
          %570 = sbr.rel (%p568) target = $region60
        $region59: #{tpu_custom_call.1} parent=51 // pred_region
          %s571 = sand.u32 %s174, 1
          %s572 = scalar_lea.sflag [#allocation5], %s571
          %s573 = sand.u32 %s174, 1
          %s574 = smul.addr %s573, 2
          %s575 = scalar_lea.vmem [#allocation4], %s574
          %576 = dma.done %s572, 32
        $region60: #{tpu_custom_call.1} parent=51 // pred_fallthru
          _
      $region52: #{tpu_custom_call.1} parent=5 // pred_fallthru
        _
    $region6: #{tpu_custom_call.1} parent=1 // loop_footer
      %s23 = sadd.s32 1, %s19
    $region7: #{tpu_custom_call.1} parent=1 // loop_footer_branch
      %18 = sbr.rel target = $region3
    $region8: #{tpu_custom_call.1} parent=1 // loop_exit
      _
    %577 = vsyncpa [#allocation3], 1
    %s578 = scalar_lea.sflag [#allocation3], 1
    %579 = vsyncpa %s578, 1
    %580 = vsyncpa [#allocation5], 1
    %s581 = scalar_lea.sflag [#allocation5], 1
    %582 = vsyncpa %s581, 1

</llo_original>
